<compile_context>
chip_gen: v7x
topology: tpu7x:2x2x1
jax: 0.10.0
libtpu: 0.0.40
codegen_flags: <defaults>
</compile_context>

<pallas_src>
import jax
import jax.numpy as jnp
from jax.experimental import pallas as pl
from jax.experimental.pallas import tpu as pltpu


def mlp_kernel(xT_ref, w1_s, b1_s, w2_ref, b2_ref, w3_ref, b3_ref,
               w4_ref, b4_ref, oT_ref):
    xT = xT_ref[...]                                    # (3, TB) f32, lane-dense

    # ---- fc1: Linear(3, 1) on the VPU (full 128-lane vregs) ----
    s = (w1_s[0] * xT[0:1, :]
         + w1_s[1] * xT[1:2, :]
         + w1_s[2] * xT[2:3, :]
         + b1_s[0])                                     # (1, TB)
    s = jnp.maximum(s, 0.0) - 0.5                       # relu; v3 = v2 - 0.5

    # ---- fc2: Linear(1, 64) == outer product -> broadcast multiply (VPU) ----
    h = w2_ref[...] * s + b2_ref[...]                   # (64,1)*(1,TB)+(64,1) -> (64, TB)
    h = jnp.maximum(h, 0.0) + 3.3                       # relu; v6 = v5 - (-3.3)

    # ---- fc3: Linear(64, 128) on the MXU (bf16 inputs, f32 accumulation) ----
    h = h.astype(w3_ref.dtype)
    h = jnp.dot(w3_ref[...], h, preferred_element_type=jnp.float32) + b3_ref[...]
    h = jnp.maximum(h, 0.0)                             # (128, TB) f32

    # ---- fc4: Linear(128, 4) on the MXU ----
    h = h.astype(w4_ref.dtype)
    o = jnp.dot(w4_ref[...], h, preferred_element_type=jnp.float32) + b4_ref[...]
    oT_ref[...] = o.astype(oT_ref.dtype)                # (4, TB) lane-dense store


def mlp_forward(x, params, *, block_b=2048, mxu_dtype=jnp.bfloat16):
    """Whole 4-layer MLP in one Pallas kernel, feature-major, batch-tiled."""
    (w1, b1), (w2, b2), (w3, b3), (w4, b4) = params     # PyTorch layout: w=(out,in), b=(out,)
    B = x.shape[0]
    out_dim = w4.shape[0]                               # 4

    # Feature-major (lane-dense) input: (3, B).
    xT = x.astype(jnp.float32).T

    # Tiny fc1 params go to SMEM as flat scalar vectors.
    w1_flat = w1.reshape(3).astype(jnp.float32)
    b1_flat = b1.reshape(1).astype(jnp.float32)

    # Column-vector biases / weights for the broadcast + MXU path.
    w2_col = w2.reshape(64, 1).astype(jnp.float32)
    b2_col = b2.reshape(64, 1).astype(jnp.float32)
    w3_m = w3.astype(mxu_dtype)                         # (128, 64)
    b3_col = b3.reshape(128, 1).astype(jnp.float32)
    w4_m = w4.astype(mxu_dtype)                         # (4, 128)
    b4_col = b4.reshape(out_dim, 1).astype(jnp.float32)

    # Batch tiling: one block for B <= block_b (no pad, no slice copies);
    # otherwise 2048-wide lane tiles with VMEM-resident weights.
    TB = B if B <= block_b else block_b
    num_blocks = pl.cdiv(B, TB)
    B_pad = num_blocks * TB
    if B_pad != B:
        xT = jnp.pad(xT, ((0, 0), (0, B_pad - B)))

    smem_spec = pl.BlockSpec(memory_space=pltpu.MemorySpace.SMEM)

    outT = pl.pallas_call(
        mlp_kernel,
        out_shape=jax.ShapeDtypeStruct((out_dim, B_pad), jnp.float32),
        grid=(num_blocks,),
        in_specs=[
            pl.BlockSpec((3, TB), lambda i: (0, i)),          # x (feature-major tile)
            smem_spec,                                        # w1 (3,) SMEM
            smem_spec,                                        # b1 (1,) SMEM
            pl.BlockSpec((64, 1), lambda i: (0, 0)),          # w2 column
            pl.BlockSpec((64, 1), lambda i: (0, 0)),          # b2 column
            pl.BlockSpec((128, 64), lambda i: (0, 0)),        # w3 (out,in)
            pl.BlockSpec((128, 1), lambda i: (0, 0)),         # b3 column
            pl.BlockSpec((out_dim, 128), lambda i: (0, 0)),   # w4 (out,in)
            pl.BlockSpec((out_dim, 1), lambda i: (0, 0)),     # b4 column
        ],
        out_specs=pl.BlockSpec((out_dim, TB), lambda i: (0, i)),
        compiler_params=pltpu.CompilerParams(
            dimension_semantics=("parallel",),                # megacore / 2-TC sharding
            vmem_limit_bytes=48 * 1024 * 1024),               # portable to v7x's 64 MiB
    )(xT, w1_flat, b1_flat, w2_col, b2_col, w3_m, b3_col, w4_m, b4_col)

    # Back to the module's (B, 4) orientation.
    return outT[:, :B].T


def init_linear(key, in_f, out_f):
    """Deterministic init mimicking PyTorch nn.Linear (uniform +/- 1/sqrt(in_f)).
    Weight is (out_f, in_f) like PyTorch; bias is (out_f,)."""
    kw, kb = jax.random.split(key)
    bound = 1.0 / (in_f ** 0.5)
    w = jax.random.uniform(kw, (out_f, in_f), jnp.float32, -bound, bound)
    b = jax.random.uniform(kb, (out_f,), jnp.float32, -bound, bound)
    return w, b


def reference_forward(x, params):
    (w1, b1), (w2, b2), (w3, b3), (w4, b4) = params
    v = jnp.maximum(x @ w1.T + b1, 0.0) - 0.5
    v = jnp.maximum(v @ w2.T + b2, 0.0) + 3.3
    v = jnp.maximum(v @ w3.T + b3, 0.0)
    return v @ w4.T + b4


if __name__ == "__main__":
    key = jax.random.PRNGKey(0)
    kx, k1, k2, k3, k4 = jax.random.split(key, 5)

    B = 2  # module example uses (1, 3); batch dim is free
    x = jax.random.normal(kx, (B, 3), jnp.float32)

    params = (
        init_linear(k1, 3, 1),
        init_linear(k2, 1, 64),
        init_linear(k3, 64, 128),
        init_linear(k4, 128, 4),
    )

    ref = reference_forward(x, params)

    # Default (bf16 MXU inputs, f32 accumulation) — fast path on v5e/v6e/v7x.
    out = mlp_forward(x, params)
    jax.block_until_ready(out)
    assert out.shape == (B, 4)
    assert jnp.allclose(out, ref, atol=5e-2, rtol=5e-2)

    # Full-f32 MXU path for a tight numerical check of the kernel structure.
    out_f32 = mlp_forward(x, params, mxu_dtype=jnp.float32)
    jax.block_until_ready(out_f32)
    assert jnp.allclose(out_f32, ref, atol=1e-4, rtol=1e-4)

    print("KERNEL_OK")
</pallas_src>

<mosaic_0001>
module attributes {stable_mosaic.version = 11 : i64} {
  func.func @mlp_kernel(%arg0: i32, %arg1: memref<3x2xf32, #tpu.memory_space<vmem>>, %arg2: memref<3xf32, #tpu.memory_space<smem>>, %arg3: memref<1xf32, #tpu.memory_space<smem>>, %arg4: memref<64x1xf32, #tpu.memory_space<vmem>>, %arg5: memref<64x1xf32, #tpu.memory_space<vmem>>, %arg6: memref<128x64xbf16, #tpu.memory_space<vmem>>, %arg7: memref<128x1xf32, #tpu.memory_space<vmem>>, %arg8: memref<4x128xbf16, #tpu.memory_space<vmem>>, %arg9: memref<4x1xf32, #tpu.memory_space<vmem>>, %arg10: memref<4x2xf32, #tpu.memory_space<vmem>>) attributes {dimension_semantics = [#tpu.dimension_semantics<parallel>], iteration_bounds = array<i64: 1>, scalar_prefetch = 0 : i64, scratch_operands = 0 : i64, tpu.core_type = #tpu.core_type<tc>, window_params = [{transform_indices = @transform_0, window_bounds = array<i64: 3, 2>}, {transform_indices = @transform_1, window_bounds = array<i64: 3>}, {transform_indices = @transform_2, window_bounds = array<i64: 1>}, {pipeline_mode = #tpu.pipeline_mode<synchronous>, transform_indices = @transform_3, window_bounds = array<i64: 64, 1>}, {pipeline_mode = #tpu.pipeline_mode<synchronous>, transform_indices = @transform_4, window_bounds = array<i64: 64, 1>}, {pipeline_mode = #tpu.pipeline_mode<synchronous>, transform_indices = @transform_5, window_bounds = array<i64: 128, 64>}, {pipeline_mode = #tpu.pipeline_mode<synchronous>, transform_indices = @transform_6, window_bounds = array<i64: 128, 1>}, {pipeline_mode = #tpu.pipeline_mode<synchronous>, transform_indices = @transform_7, window_bounds = array<i64: 4, 128>}, {pipeline_mode = #tpu.pipeline_mode<synchronous>, transform_indices = @transform_8, window_bounds = array<i64: 4, 1>}, {transform_indices = @transform_9, window_bounds = array<i64: 4, 2>}]} {
    %c0 = arith.constant 0 : index
    %c0_0 = arith.constant 0 : index
    %0 = vector.load %arg1[%c0, %c0_0] : memref<3x2xf32, #tpu.memory_space<vmem>>, vector<3x2xf32>
    %c0_1 = arith.constant 0 : index
    %1 = memref.load %arg2[%c0_1] : memref<3xf32, #tpu.memory_space<smem>>
    %2 = vector.extract_strided_slice %0 {offsets = [0, 0], sizes = [1, 2], strides = [1, 1]} : vector<3x2xf32> to vector<1x2xf32>
    %3 = vector.broadcast %1 : f32 to vector<1x2xf32>
    %4 = arith.mulf %3, %2 : vector<1x2xf32>
    %c1 = arith.constant 1 : index
    %5 = memref.load %arg2[%c1] : memref<3xf32, #tpu.memory_space<smem>>
    %6 = vector.extract_strided_slice %0 {offsets = [1, 0], sizes = [1, 2], strides = [1, 1]} : vector<3x2xf32> to vector<1x2xf32>
    %7 = vector.broadcast %5 : f32 to vector<1x2xf32>
    %8 = arith.mulf %7, %6 : vector<1x2xf32>
    %9 = arith.addf %4, %8 : vector<1x2xf32>
    %c2 = arith.constant 2 : index
    %10 = memref.load %arg2[%c2] : memref<3xf32, #tpu.memory_space<smem>>
    %11 = vector.extract_strided_slice %0 {offsets = [2, 0], sizes = [1, 2], strides = [1, 1]} : vector<3x2xf32> to vector<1x2xf32>
    %12 = vector.broadcast %10 : f32 to vector<1x2xf32>
    %13 = arith.mulf %12, %11 : vector<1x2xf32>
    %14 = arith.addf %9, %13 : vector<1x2xf32>
    %c0_2 = arith.constant 0 : index
    %15 = memref.load %arg3[%c0_2] : memref<1xf32, #tpu.memory_space<smem>>
    %16 = vector.broadcast %15 : f32 to vector<1x2xf32>
    %17 = arith.addf %14, %16 : vector<1x2xf32>
    %cst = arith.constant 0.000000e+00 : f32
    %18 = vector.broadcast %cst : f32 to vector<1x2xf32>
    %19 = arith.maximumf %17, %18 : vector<1x2xf32>
    %cst_3 = arith.constant 5.000000e-01 : f32
    %20 = vector.broadcast %cst_3 : f32 to vector<1x2xf32>
    %21 = arith.subf %19, %20 : vector<1x2xf32>
    %c0_4 = arith.constant 0 : index
    %c0_5 = arith.constant 0 : index
    %22 = vector.load %arg4[%c0_4, %c0_5] : memref<64x1xf32, #tpu.memory_space<vmem>>, vector<64x1xf32>
    %23 = vector.broadcast %22 : vector<64x1xf32> to vector<64x2xf32>
    %24 = vector.broadcast %21 : vector<1x2xf32> to vector<64x2xf32>
    %25 = arith.mulf %23, %24 : vector<64x2xf32>
    %c0_6 = arith.constant 0 : index
    %c0_7 = arith.constant 0 : index
    %26 = vector.load %arg5[%c0_6, %c0_7] : memref<64x1xf32, #tpu.memory_space<vmem>>, vector<64x1xf32>
    %27 = vector.broadcast %26 : vector<64x1xf32> to vector<64x2xf32>
    %28 = arith.addf %25, %27 : vector<64x2xf32>
    %cst_8 = arith.constant 0.000000e+00 : f32
    %29 = vector.broadcast %cst_8 : f32 to vector<64x2xf32>
    %30 = arith.maximumf %28, %29 : vector<64x2xf32>
    %cst_9 = arith.constant 3.300000e+00 : f32
    %31 = vector.broadcast %cst_9 : f32 to vector<64x2xf32>
    %32 = arith.addf %30, %31 : vector<64x2xf32>
    %33 = arith.truncf %32 : vector<64x2xf32> to vector<64x2xbf16>
    %c0_10 = arith.constant 0 : index
    %c0_11 = arith.constant 0 : index
    %34 = vector.load %arg6[%c0_10, %c0_11] : memref<128x64xbf16, #tpu.memory_space<vmem>>, vector<128x64xbf16>
    %cst_12 = arith.constant dense<0.000000e+00> : vector<128x2xf32>
    %35 = tpu.matmul %34, %33, %cst_12 {dimension_numbers = #tpu.dot_dimension_numbers<[1], [0], [0], [1], [0, 0, 1, 1], [], []>} : vector<128x64xbf16>, vector<64x2xbf16>, vector<128x2xf32> -> vector<128x2xf32>
    %c0_13 = arith.constant 0 : index
    %c0_14 = arith.constant 0 : index
    %36 = vector.load %arg7[%c0_13, %c0_14] : memref<128x1xf32, #tpu.memory_space<vmem>>, vector<128x1xf32>
    %37 = vector.broadcast %36 : vector<128x1xf32> to vector<128x2xf32>
    %38 = arith.addf %35, %37 : vector<128x2xf32>
    %cst_15 = arith.constant 0.000000e+00 : f32
    %39 = vector.broadcast %cst_15 : f32 to vector<128x2xf32>
    %40 = arith.maximumf %38, %39 : vector<128x2xf32>
    %41 = arith.truncf %40 : vector<128x2xf32> to vector<128x2xbf16>
    %c0_16 = arith.constant 0 : index
    %c0_17 = arith.constant 0 : index
    %42 = vector.load %arg8[%c0_16, %c0_17] : memref<4x128xbf16, #tpu.memory_space<vmem>>, vector<4x128xbf16>
    %cst_18 = arith.constant dense<0.000000e+00> : vector<4x2xf32>
    %43 = tpu.matmul %42, %41, %cst_18 {dimension_numbers = #tpu.dot_dimension_numbers<[1], [0], [0], [1], [0, 0, 1, 1], [], []>} : vector<4x128xbf16>, vector<128x2xbf16>, vector<4x2xf32> -> vector<4x2xf32>
    %c0_19 = arith.constant 0 : index
    %c0_20 = arith.constant 0 : index
    %44 = vector.load %arg9[%c0_19, %c0_20] : memref<4x1xf32, #tpu.memory_space<vmem>>, vector<4x1xf32>
    %45 = vector.broadcast %44 : vector<4x1xf32> to vector<4x2xf32>
    %46 = arith.addf %43, %45 : vector<4x2xf32>
    %c0_21 = arith.constant 0 : index
    %c0_22 = arith.constant 0 : index
    %47 = vector.load %arg10[%c0_21, %c0_22] : memref<4x2xf32, #tpu.memory_space<vmem>>, vector<4x2xf32>
    tpu.vector_store %arg10[%c0_21, %c0_22], %46 {strides = array<i32>} : memref<4x2xf32, #tpu.memory_space<vmem>>, vector<4x2xf32>,
    return
  }
  func.func @transform_0(%arg0: i32) -> (i32, i32) {
    %c0_i32 = arith.constant 0 : i32
    %c0_i32_0 = arith.constant 0 : i32
    return %c0_i32, %arg0 : i32, i32
  }
  func.func @transform_1(%arg0: i32) -> i32 {
    %c0_i32 = arith.constant 0 : i32
    %c0_i32_0 = arith.constant 0 : i32
    return %c0_i32 : i32
  }
  func.func @transform_2(%arg0: i32) -> i32 {
    %c0_i32 = arith.constant 0 : i32
    %c0_i32_0 = arith.constant 0 : i32
    return %c0_i32 : i32
  }
  func.func @transform_3(%arg0: i32) -> (i32, i32) {
    %c0_i32 = arith.constant 0 : i32
    %c0_i32_0 = arith.constant 0 : i32
    %c0_i32_1 = arith.constant 0 : i32
    return %c0_i32, %c0_i32_0 : i32, i32
  }
  func.func @transform_4(%arg0: i32) -> (i32, i32) {
    %c0_i32 = arith.constant 0 : i32
    %c0_i32_0 = arith.constant 0 : i32
    %c0_i32_1 = arith.constant 0 : i32
    return %c0_i32, %c0_i32_0 : i32, i32
  }
  func.func @transform_5(%arg0: i32) -> (i32, i32) {
    %c0_i32 = arith.constant 0 : i32
    %c0_i32_0 = arith.constant 0 : i32
    %c0_i32_1 = arith.constant 0 : i32
    return %c0_i32, %c0_i32_0 : i32, i32
  }
  func.func @transform_6(%arg0: i32) -> (i32, i32) {
    %c0_i32 = arith.constant 0 : i32
    %c0_i32_0 = arith.constant 0 : i32
    %c0_i32_1 = arith.constant 0 : i32
    return %c0_i32, %c0_i32_0 : i32, i32
  }
  func.func @transform_7(%arg0: i32) -> (i32, i32) {
    %c0_i32 = arith.constant 0 : i32
    %c0_i32_0 = arith.constant 0 : i32
    %c0_i32_1 = arith.constant 0 : i32
    return %c0_i32, %c0_i32_0 : i32, i32
  }
  func.func @transform_8(%arg0: i32) -> (i32, i32) {
    %c0_i32 = arith.constant 0 : i32
    %c0_i32_0 = arith.constant 0 : i32
    %c0_i32_1 = arith.constant 0 : i32
    return %c0_i32, %c0_i32_0 : i32, i32
  }
  func.func @transform_9(%arg0: i32) -> (i32, i32) {
    %c0_i32 = arith.constant 0 : i32
    %c0_i32_0 = arith.constant 0 : i32
    return %c0_i32, %arg0 : i32, i32
  }
}

</mosaic_0001>

<llo_original>
// kernel: tpu_custom_call.1
$region0: #{tpu_custom_call.1}
  #allocation0 [shape = 'u32[]', space=smem, size = 0x4, offset = 0x4, fixed_abs, tag = 'smem constant byte address 0x4 - core index']
  #allocation1 [shape = 'u32[144,128]{1,0:T(1,128)}', space=vmem, size = 0x12000, scoped, tag = 'internal scratch']
  #allocation2 [shape = 'f32[1]{0:T(128)S(6)}', space=smem, size = 0x200, scoped, tag = 'scoped memory for tpu_custom_call.1']
  %s0 = inlined_call_operand.vmem [shape: f32[3,2], index: 0, kind: input, shape index: {}]
  %s1 = inlined_call_operand.vmem [shape: f32[3], index: 1, kind: input, shape index: {}]
  %s2 = inlined_call_operand.<no memory space> [shape: f32[1], index: 2, kind: input, shape index: {}]
  %s3 = inlined_call_operand.vmem [shape: f32[64,1], index: 3, kind: input, shape index: {}]
  %s4 = inlined_call_operand.vmem [shape: f32[64,1], index: 4, kind: input, shape index: {}]
  %s5 = inlined_call_operand.vmem [shape: bf16[128,64], index: 5, kind: input, shape index: {}]
  %s6 = inlined_call_operand.vmem [shape: f32[128,1], index: 6, kind: input, shape index: {}]
  %s7 = inlined_call_operand.vmem [shape: bf16[4,128], index: 7, kind: input, shape index: {}]
  %s8 = inlined_call_operand.vmem [shape: f32[4,1], index: 8, kind: input, shape index: {}]
  %s9 = inlined_call_operand.vmem [shape: f32[4,2], index: 9, kind: output, shape index: {}]
  %s10 = sld [smem:[#allocation0]]
  $region50: #{tpu_custom_call.1} parent=0
    _
  %s12 = ssub.s32 1, %s10
  %s13 = scalar_select 0, %s12, %s10
  %14 = sst [smem:[#allocation2]] %s2
  $region1: #{tpu_custom_call.1} parent=0
    #allocation3 [shape = 'u8[512]{0}', space=smem, size = 0x200, scoped, tag = 'input window, operand 1, single buffered']
    #allocation4 [shape = 's32[1]{0}', space=sflag, size = 0x4, scoped, tag = 'scoped memory for tpu_custom_call.1']
    %15 = vsyncpa [#allocation4], 0
    // Predicated region
    $region2: #{tpu_custom_call.1} parent=1 // pred_check
      _
    $region3: #{tpu_custom_call.1} parent=1 // pred_check_branch
      %17 = sbr.rel (0) target = $region5
    $region4: #{tpu_custom_call.1} parent=1 // pred_region
      _
    $region5: #{tpu_custom_call.1} parent=1 // pred_fallthru
      _
    // Predicated region
    $region6: #{tpu_custom_call.1} parent=1 // pred_check
      _
    $region7: #{tpu_custom_call.1} parent=1 // pred_check_branch
      %19 = sbr.rel (0) target = $region9
    $region8: #{tpu_custom_call.1} parent=1 // pred_region
      %s21 = ssub.s32 16, 16
      %22 = vsyncadd [#allocation4], %s21
      %s24 = sshll.u32 %s1, 4
      %s25 = int_to_ptr.vmem [resolvable:$true] %s24
      %27 = dma.vmem_to_smem %s25, 16, [#allocation3], [#allocation4]
    $region9: #{tpu_custom_call.1} parent=1 // pred_fallthru
      _
    // Predicated region
    $region10: #{tpu_custom_call.1} parent=1 // pred_check
      _
    $region11: #{tpu_custom_call.1} parent=1 // pred_check_branch
      %29 = sbr.rel (0) target = $region13
    $region12: #{tpu_custom_call.1} parent=1 // pred_region
      _
    $region13: #{tpu_custom_call.1} parent=1 // pred_fallthru
      _
    // Predicated region
    $region14: #{tpu_custom_call.1} parent=1 // pred_check
      _
    $region15: #{tpu_custom_call.1} parent=1 // pred_check_branch
      %31 = sbr.rel (0) target = $region17
    $region16: #{tpu_custom_call.1} parent=1 // pred_region
      _
    $region17: #{tpu_custom_call.1} parent=1 // pred_fallthru
      _
    // Predicated region
    $region18: #{tpu_custom_call.1} parent=1 // pred_check
      _
    $region19: #{tpu_custom_call.1} parent=1 // pred_check_branch
      %33 = sbr.rel (0) target = $region21
    $region20: #{tpu_custom_call.1} parent=1 // pred_region
      _
    $region21: #{tpu_custom_call.1} parent=1 // pred_fallthru
      _
    // Predicated region
    $region22: #{tpu_custom_call.1} parent=1 // pred_check
      _
    $region23: #{tpu_custom_call.1} parent=1 // pred_check_branch
      %35 = sbr.rel (0) target = $region25
    $region24: #{tpu_custom_call.1} parent=1 // pred_region
      _
    $region25: #{tpu_custom_call.1} parent=1 // pred_fallthru
      _
    // Predicated region
    $region26: #{tpu_custom_call.1} parent=1 // pred_check
      _
    $region27: #{tpu_custom_call.1} parent=1 // pred_check_branch
      %37 = sbr.rel (0) target = $region29
    $region28: #{tpu_custom_call.1} parent=1 // pred_region
      _
    $region29: #{tpu_custom_call.1} parent=1 // pred_fallthru
      _
    // Predicated region
    $region30: #{tpu_custom_call.1} parent=1 // pred_check
      _
    $region31: #{tpu_custom_call.1} parent=1 // pred_check_branch
      %39 = sbr.rel (0) target = $region33
    $region32: #{tpu_custom_call.1} parent=1 // pred_region
      _
    $region33: #{tpu_custom_call.1} parent=1 // pred_fallthru
      _
    // Predicated region
    $region34: #{tpu_custom_call.1} parent=1 // pred_check
      _
    $region35: #{tpu_custom_call.1} parent=1 // pred_check_branch
      %41 = sbr.rel (0) target = $region37
    $region36: #{tpu_custom_call.1} parent=1 // pred_region
      _
    $region37: #{tpu_custom_call.1} parent=1 // pred_fallthru
      _
    // Predicated region
    $region38: #{tpu_custom_call.1} parent=1 // pred_check
      _
    $region39: #{tpu_custom_call.1} parent=1 // pred_check_branch
      %43 = sbr.rel (0) target = $region41
    $region40: #{tpu_custom_call.1} parent=1 // pred_region
      %44 = dma.done [#allocation4], 16
    $region41: #{tpu_custom_call.1} parent=1 // pred_fallthru
      _
    %45 = sfence
    %v47 = vld [vmem:[%s0] sm:$0x7]
    %s48 = sld [smem:[#allocation3]]
    %v49 = vstv %s48
    %v50 = vmul.f32 %v49, %v47
    %s51 = sld [smem:[#allocation3 + $0x1]]
    %v52 = vstv %s51
    %v53 = vmul.f32 %v52, %v47
    %v55 = vrot.slane %v53, 1
    %v57 = vadd.f32 %v50, %v55
    %s58 = sld [smem:[#allocation3 + $0x2]]
    %v59 = vstv %s58
    %v60 = vmul.f32 %v59, %v47
    %v62 = vrot.slane %v60, 2
    %v64 = vadd.f32 %v57, %v62
    %s65 = sld [smem:[#allocation2]]
    %v66 = vstv %s65
    %v67 = vadd.f32 %v64, %v66
    %v68 = vmax.f32 %v67, 0.0
    %v69 = vsub.f32 %v68, 0.5
    %v70 = vld [vmem:[%s3] sm:$0xff]
    %v71 = vld [vmem:[%s3 + $0x8] sm:$0xff]
    %v72 = vld [vmem:[%s3 + $0x10] sm:$0xff]
    %v73 = vld [vmem:[%s3 + $0x18] sm:$0xff]
    %v74 = vld [vmem:[%s3 + $0x20] sm:$0xff]
    %v75 = vld [vmem:[%s3 + $0x28] sm:$0xff]
    %v76 = vld [vmem:[%s3 + $0x30] sm:$0xff]
    %v77 = vld [vmem:[%s3 + $0x38] sm:$0xff]
    %79 = vset.pattern.permute.xlu0 0
    %80 = vperm.xlu0 %79, %v70
    %v81 = vpop.permute.xlu0 %80
    %84 = vset.pattern.permute.xlu0 0
    %85 = vperm.xlu0 %84, %v71
    %v86 = vpop.permute.xlu0 %85
    %89 = vset.pattern.permute.xlu0 0
    %90 = vperm.xlu0 %89, %v72
    %v91 = vpop.permute.xlu0 %90
    %94 = vset.pattern.permute.xlu0 0
    %95 = vperm.xlu0 %94, %v73
    %v96 = vpop.permute.xlu0 %95
    %99 = vset.pattern.permute.xlu0 0
    %100 = vperm.xlu0 %99, %v74
    %v101 = vpop.permute.xlu0 %100
    %104 = vset.pattern.permute.xlu0 0
    %105 = vperm.xlu0 %104, %v75
    %v106 = vpop.permute.xlu0 %105
    %109 = vset.pattern.permute.xlu0 0
    %110 = vperm.xlu0 %109, %v76
    %v111 = vpop.permute.xlu0 %110
    %114 = vset.pattern.permute.xlu0 0
    %115 = vperm.xlu0 %114, %v77
    %v116 = vpop.permute.xlu0 %115
    %v118 = vlaneseq
    %v119 = vshrl.u32 %v118, 7
    %v120 = vsub.s32 0, %v119
    %v121 = vrot.slane %v69, %v120
    %v122 = vmul.f32 %v81, %v121
    %v123 = vmul.f32 %v86, %v121
    %v124 = vmul.f32 %v91, %v121
    %v125 = vmul.f32 %v96, %v121
    %v126 = vmul.f32 %v101, %v121
    %v127 = vmul.f32 %v106, %v121
    %v128 = vmul.f32 %v111, %v121
    %v129 = vmul.f32 %v116, %v121
    %v130 = vld [vmem:[%s4] sm:$0xff]
    %v131 = vld [vmem:[%s4 + $0x8] sm:$0xff]
    %v132 = vld [vmem:[%s4 + $0x10] sm:$0xff]
    %v133 = vld [vmem:[%s4 + $0x18] sm:$0xff]
    %v134 = vld [vmem:[%s4 + $0x20] sm:$0xff]
    %v135 = vld [vmem:[%s4 + $0x28] sm:$0xff]
    %v136 = vld [vmem:[%s4 + $0x30] sm:$0xff]
    %v137 = vld [vmem:[%s4 + $0x38] sm:$0xff]
    %139 = vset.pattern.permute.xlu0 0
    %140 = vperm.xlu0 %139, %v130
    %v141 = vpop.permute.xlu0 %140
    %144 = vset.pattern.permute.xlu0 0
    %145 = vperm.xlu0 %144, %v131
    %v146 = vpop.permute.xlu0 %145
    %149 = vset.pattern.permute.xlu0 0
    %150 = vperm.xlu0 %149, %v132
    %v151 = vpop.permute.xlu0 %150
    %154 = vset.pattern.permute.xlu0 0
    %155 = vperm.xlu0 %154, %v133
    %v156 = vpop.permute.xlu0 %155
    %159 = vset.pattern.permute.xlu0 0
    %160 = vperm.xlu0 %159, %v134
    %v161 = vpop.permute.xlu0 %160
    %164 = vset.pattern.permute.xlu0 0
    %165 = vperm.xlu0 %164, %v135
    %v166 = vpop.permute.xlu0 %165
    %169 = vset.pattern.permute.xlu0 0
    %170 = vperm.xlu0 %169, %v136
    %v171 = vpop.permute.xlu0 %170
    %174 = vset.pattern.permute.xlu0 0
    %175 = vperm.xlu0 %174, %v137
    %v176 = vpop.permute.xlu0 %175
    %v178 = vadd.f32 %v122, %v141
    %v179 = vadd.f32 %v123, %v146
    %v180 = vadd.f32 %v124, %v151
    %v181 = vadd.f32 %v125, %v156
    %v182 = vadd.f32 %v126, %v161
    %v183 = vadd.f32 %v127, %v166
    %v184 = vadd.f32 %v128, %v171
    %v185 = vadd.f32 %v129, %v176
    %v186 = vmax.f32 %v178, 0.0
    %v187 = vmax.f32 %v179, 0.0
    %v188 = vmax.f32 %v180, 0.0
    %v189 = vmax.f32 %v181, 0.0
    %v190 = vmax.f32 %v182, 0.0
    %v191 = vmax.f32 %v183, 0.0
    %v192 = vmax.f32 %v184, 0.0
    %v193 = vmax.f32 %v185, 0.0
    %v194 = vadd.f32 %v186, 3.3
    %v195 = vadd.f32 %v187, 3.3
    %v196 = vadd.f32 %v188, 3.3
    %v197 = vadd.f32 %v189, 3.3
    %v198 = vadd.f32 %v190, 3.3
    %v199 = vadd.f32 %v191, 3.3
    %v200 = vadd.f32 %v192, 3.3
    %v201 = vadd.f32 %v193, 3.3
    %v202 = vpack.c.bf16 %v195, %v194
    %v203 = vpack.c.bf16 %v197, %v196
    %v204 = vpack.c.bf16 %v199, %v198
    %v205 = vpack.c.bf16 %v201, %v200
    %v206 = vld [vmem:[%s5] sm:$0xf]
    %v207 = vld [vmem:[%s5 + $0x4] sm:$0xf]
    %v208 = vld [vmem:[%s5 + $0x8] sm:$0xf]
    %v209 = vld [vmem:[%s5 + $0xc] sm:$0xf]
    %v210 = vld [vmem:[%s5 + $0x10] sm:$0xf]
    %v211 = vld [vmem:[%s5 + $0x14] sm:$0xf]
    %v212 = vld [vmem:[%s5 + $0x18] sm:$0xf]
    %v213 = vld [vmem:[%s5 + $0x1c] sm:$0xf]
    %v214 = vld [vmem:[%s5 + $0x20] sm:$0xf]
    %v215 = vld [vmem:[%s5 + $0x24] sm:$0xf]
    %v216 = vld [vmem:[%s5 + $0x28] sm:$0xf]
    %v217 = vld [vmem:[%s5 + $0x2c] sm:$0xf]
    %v218 = vld [vmem:[%s5 + $0x30] sm:$0xf]
    %v219 = vld [vmem:[%s5 + $0x34] sm:$0xf]
    %v220 = vld [vmem:[%s5 + $0x38] sm:$0xf]
    %v221 = vld [vmem:[%s5 + $0x3c] sm:$0xf]
    %v222 = vld [vmem:[%s6] sm:$0xff]
    %v223 = vld [vmem:[%s6 + $0x8] sm:$0xff]
    %v224 = vld [vmem:[%s6 + $0x10] sm:$0xff]
    %v225 = vld [vmem:[%s6 + $0x18] sm:$0xff]
    %v226 = vld [vmem:[%s6 + $0x20] sm:$0xff]
    %v227 = vld [vmem:[%s6 + $0x28] sm:$0xff]
    %v228 = vld [vmem:[%s6 + $0x30] sm:$0xff]
    %v229 = vld [vmem:[%s6 + $0x38] sm:$0xff]
    %v230 = vld [vmem:[%s6 + $0x40] sm:$0xff]
    %v231 = vld [vmem:[%s6 + $0x48] sm:$0xff]
    %v232 = vld [vmem:[%s6 + $0x50] sm:$0xff]
    %v233 = vld [vmem:[%s6 + $0x58] sm:$0xff]
    %v234 = vld [vmem:[%s6 + $0x60] sm:$0xff]
    %v235 = vld [vmem:[%s6 + $0x68] sm:$0xff]
    %v236 = vld [vmem:[%s6 + $0x70] sm:$0xff]
    %v237 = vld [vmem:[%s6 + $0x78] sm:$0xff]
    %239 = vset.pattern.permute.xlu0 0
    %240 = vperm.xlu0 %239, %v222
    %v241 = vpop.permute.xlu0 %240
    %244 = vset.pattern.permute.xlu0 0
    %245 = vperm.xlu0 %244, %v223
    %v246 = vpop.permute.xlu0 %245
    %249 = vset.pattern.permute.xlu0 0
    %250 = vperm.xlu0 %249, %v224
    %v251 = vpop.permute.xlu0 %250
    %254 = vset.pattern.permute.xlu0 0
    %255 = vperm.xlu0 %254, %v225
    %v256 = vpop.permute.xlu0 %255
    %259 = vset.pattern.permute.xlu0 0
    %260 = vperm.xlu0 %259, %v226
    %v261 = vpop.permute.xlu0 %260
    %264 = vset.pattern.permute.xlu0 0
    %265 = vperm.xlu0 %264, %v227
    %v266 = vpop.permute.xlu0 %265
    %269 = vset.pattern.permute.xlu0 0
    %270 = vperm.xlu0 %269, %v228
    %v271 = vpop.permute.xlu0 %270
    %274 = vset.pattern.permute.xlu0 0
    %275 = vperm.xlu0 %274, %v229
    %v276 = vpop.permute.xlu0 %275
    %279 = vset.pattern.permute.xlu0 0
    %280 = vperm.xlu0 %279, %v230
    %v281 = vpop.permute.xlu0 %280
    %284 = vset.pattern.permute.xlu0 0
    %285 = vperm.xlu0 %284, %v231
    %v286 = vpop.permute.xlu0 %285
    %289 = vset.pattern.permute.xlu0 0
    %290 = vperm.xlu0 %289, %v232
    %v291 = vpop.permute.xlu0 %290
    %294 = vset.pattern.permute.xlu0 0
    %295 = vperm.xlu0 %294, %v233
    %v296 = vpop.permute.xlu0 %295
    %299 = vset.pattern.permute.xlu0 0
    %300 = vperm.xlu0 %299, %v234
    %v301 = vpop.permute.xlu0 %300
    %304 = vset.pattern.permute.xlu0 0
    %305 = vperm.xlu0 %304, %v235
    %v306 = vpop.permute.xlu0 %305
    %309 = vset.pattern.permute.xlu0 0
    %310 = vperm.xlu0 %309, %v236
    %v311 = vpop.permute.xlu0 %310
    %314 = vset.pattern.permute.xlu0 0
    %315 = vperm.xlu0 %314, %v237
    %v316 = vpop.permute.xlu0 %315
    %v334 = vunpack.c.l.b16 %v206
    %v335 = vunpack.c.l.b16 %v207
    %v336 = vunpack.c.l.b16 %v208
    %v337 = vunpack.c.l.b16 %v209
    %v338 = vunpack.c.l.b16 %v210
    %v339 = vunpack.c.l.b16 %v211
    %v340 = vunpack.c.l.b16 %v212
    %v341 = vunpack.c.l.b16 %v213
    %v342 = vunpack.c.l.b16 %v214
    %v343 = vunpack.c.l.b16 %v215
    %v344 = vunpack.c.l.b16 %v216
    %v345 = vunpack.c.l.b16 %v217
    %v346 = vunpack.c.l.b16 %v218
    %v347 = vunpack.c.l.b16 %v219
    %v348 = vunpack.c.l.b16 %v220
    %v349 = vunpack.c.l.b16 %v221
    %v350 = vpack.c.b16 %v335, %v334
    %v351 = vpack.c.b16 %v337, %v336
    %v352 = vpack.c.b16 %v339, %v338
    %v353 = vpack.c.b16 %v341, %v340
    %v354 = vpack.c.b16 %v343, %v342
    %v355 = vpack.c.b16 %v345, %v344
    %v356 = vpack.c.b16 %v347, %v346
    %v357 = vpack.c.b16 %v349, %v348
    %vm358 = vcmask 523264
    %v360 = vsel %vm358, %v350, 0
    %v363 = vsel %vm358, %v351, 0
    %v366 = vsel %vm358, %v352, 0
    %v369 = vsel %vm358, %v353, 0
    %v372 = vsel %vm358, %v354, 0
    %v375 = vsel %vm358, %v355, 0
    %v378 = vsel %vm358, %v356, 0
    %v381 = vsel %vm358, %v357, 0
    %383 = vmatprep.subr.bf16.mxu0 0
    %384 = vmatpush1.bf16.msra.mxu0 %v202
    %385 = vmatprep.subr.bf16.mxu0 0
    %386 = vmatpush1.bf16.msra.mxu0 %v203
    %387 = vmatprep.subr.bf16.mxu0 0
    %388 = vmatpush1.bf16.msra.mxu0 %v204
    %389 = vmatprep.subr.bf16.mxu0 0
    %390 = vmatpush1.bf16.msra.mxu0 %v205
    %391 = vmatprep.subr.bf16.mxu0 0
    %392 = vmatpush1.bf16.msra.mxu0 0
    %393 = vmatprep.subr.bf16.mxu0 0
    %394 = vmatpush1.bf16.msra.mxu0 0
    %395 = vmatprep.subr.bf16.mxu0 0
    %396 = vmatpush1.bf16.msra.mxu0 0
    %397 = vmatprep.subr.bf16.mxu0 0
    %398 = vmatpush1.bf16.msra.mxu0 0
    %399 = vmatprep.subr.bf16.mxu0 0
    %400 = vmatpush1.bf16.msra.mxu0 0
    %401 = vmatprep.subr.bf16.mxu0 0
    %402 = vmatpush1.bf16.msra.mxu0 0
    %403 = vmatprep.subr.bf16.mxu0 0
    %404 = vmatpush1.bf16.msra.mxu0 0
    %405 = vmatprep.subr.bf16.mxu0 0
    %406 = vmatpush1.bf16.msra.mxu0 0
    %407 = vmatprep.subr.bf16.mxu0 0
    %408 = vmatpush1.bf16.msra.mxu0 0
    %409 = vmatprep.subr.bf16.mxu0 0
    %410 = vmatpush1.bf16.msra.mxu0 0
    %411 = vmatprep.subr.bf16.mxu0 0
    %412 = vmatpush1.bf16.msra.mxu0 0
    %413 = vmatprep.subr.bf16.mxu0 0
    %414 = vmatpush1.bf16.msra.mxu0 0
    %415 = vmatprep.mubr.bf16.mxu0 0
    %416 = vmatmul.mubr.bf16.gmra.mrb[0].mxu0 %v360
    %v417 = vpop.f32.mrb[0].mxu0
    %v418 = vadd.f32 %v241, %v417
    %v419 = vpop.f32.mrb[0].mxu0
    %v420 = vpop.f32.mrb[0].mxu0
    %v421 = vadd.f32 %v246, %v420
    %v422 = vpop.f32.mrb[0].mxu0
    %423 = vmatprep.mubr.bf16.mxu0 0
    %424 = vmatmul.mubr.bf16.gmra.mrb[0].mxu0 %v363
    %v425 = vpop.f32.mrb[0].mxu0
    %v426 = vadd.f32 %v251, %v425
    %v427 = vpop.f32.mrb[0].mxu0
    %v428 = vpop.f32.mrb[0].mxu0
    %v429 = vadd.f32 %v256, %v428
    %v430 = vpop.f32.mrb[0].mxu0
    %431 = vmatprep.mubr.bf16.mxu0 0
    %432 = vmatmul.mubr.bf16.gmra.mrb[0].mxu0 %v366
    %v433 = vpop.f32.mrb[0].mxu0
    %v434 = vadd.f32 %v261, %v433
    %v435 = vpop.f32.mrb[0].mxu0
    %v436 = vpop.f32.mrb[0].mxu0
    %v437 = vadd.f32 %v266, %v436
    %v438 = vpop.f32.mrb[0].mxu0
    %439 = vmatprep.mubr.bf16.mxu0 0
    %440 = vmatmul.mubr.bf16.gmra.mrb[0].mxu0 %v369
    %v441 = vpop.f32.mrb[0].mxu0
    %v442 = vadd.f32 %v271, %v441
    %v443 = vpop.f32.mrb[0].mxu0
    %v444 = vpop.f32.mrb[0].mxu0
    %v445 = vadd.f32 %v276, %v444
    %v446 = vpop.f32.mrb[0].mxu0
    %447 = vmatprep.mubr.bf16.mxu0 0
    %448 = vmatmul.mubr.bf16.gmra.mrb[0].mxu0 %v372
    %v449 = vpop.f32.mrb[0].mxu0
    %v450 = vadd.f32 %v281, %v449
    %v451 = vpop.f32.mrb[0].mxu0
    %v452 = vpop.f32.mrb[0].mxu0
    %v453 = vadd.f32 %v286, %v452
    %v454 = vpop.f32.mrb[0].mxu0
    %455 = vmatprep.mubr.bf16.mxu0 0
    %456 = vmatmul.mubr.bf16.gmra.mrb[0].mxu0 %v375
    %v457 = vpop.f32.mrb[0].mxu0
    %v458 = vadd.f32 %v291, %v457
    %v459 = vpop.f32.mrb[0].mxu0
    %v460 = vpop.f32.mrb[0].mxu0
    %v461 = vadd.f32 %v296, %v460
    %v462 = vpop.f32.mrb[0].mxu0
    %463 = vmatprep.mubr.bf16.mxu0 0
    %464 = vmatmul.mubr.bf16.gmra.mrb[0].mxu0 %v378
    %v465 = vpop.f32.mrb[0].mxu0
    %v466 = vadd.f32 %v301, %v465
    %v467 = vpop.f32.mrb[0].mxu0
    %v468 = vpop.f32.mrb[0].mxu0
    %v469 = vadd.f32 %v306, %v468
    %v470 = vpop.f32.mrb[0].mxu0
    %471 = vmatprep.mubr.bf16.mxu0 0
    %472 = vmatmul.mubr.bf16.gmra.mrb[0].mxu0 %v381
    %v473 = vpop.f32.mrb[0].mxu0
    %v474 = vadd.f32 %v311, %v473
    %v475 = vpop.f32.mrb[0].mxu0
    %v476 = vpop.f32.mrb[0].mxu0
    %v477 = vadd.f32 %v316, %v476
    %v478 = vpop.f32.mrb[0].mxu0
    %479 = vdwg.mxu0
    %v480 = vmax.f32 %v418, 0.0
    %v481 = vmax.f32 %v421, 0.0
    %v482 = vmax.f32 %v426, 0.0
    %v483 = vmax.f32 %v429, 0.0
    %v484 = vmax.f32 %v434, 0.0
    %v485 = vmax.f32 %v437, 0.0
    %v486 = vmax.f32 %v442, 0.0
    %v487 = vmax.f32 %v445, 0.0
    %v488 = vmax.f32 %v450, 0.0
    %v489 = vmax.f32 %v453, 0.0
    %v490 = vmax.f32 %v458, 0.0
    %v491 = vmax.f32 %v461, 0.0
    %v492 = vmax.f32 %v466, 0.0
    %v493 = vmax.f32 %v469, 0.0
    %v494 = vmax.f32 %v474, 0.0
    %v495 = vmax.f32 %v477, 0.0
    %v496 = vpack.c.bf16 %v481, %v480
    %v497 = vpack.c.bf16 %v483, %v482
    %v498 = vpack.c.bf16 %v485, %v484
    %v499 = vpack.c.bf16 %v487, %v486
    %v500 = vpack.c.bf16 %v489, %v488
    %v501 = vpack.c.bf16 %v491, %v490
    %v502 = vpack.c.bf16 %v493, %v492
    %v503 = vpack.c.bf16 %v495, %v494
    %v504 = vld [vmem:[%s7] sm:$0x3]
    %v505 = vld [vmem:[%s8] sm:$0xf]
    %507 = vset.pattern.permute.xlu0 0
    %508 = vperm.xlu0 %507, %v505
    %v509 = vpop.permute.xlu0 %508
    %511 = vmatprep.subr.bf16.mxu0 0
    %512 = vmatpush1.bf16.msra.mxu0 %v496
    %513 = vmatprep.subr.bf16.mxu0 0
    %514 = vmatpush1.bf16.msra.mxu0 %v497
    %515 = vmatprep.subr.bf16.mxu0 0
    %516 = vmatpush1.bf16.msra.mxu0 %v498
    %517 = vmatprep.subr.bf16.mxu0 0
    %518 = vmatpush1.bf16.msra.mxu0 %v499
    %519 = vmatprep.subr.bf16.mxu0 0
    %520 = vmatpush1.bf16.msra.mxu0 %v500
    %521 = vmatprep.subr.bf16.mxu0 0
    %522 = vmatpush1.bf16.msra.mxu0 %v501
    %523 = vmatprep.subr.bf16.mxu0 0
    %524 = vmatpush1.bf16.msra.mxu0 %v502
    %525 = vmatprep.subr.bf16.mxu0 0
    %526 = vmatpush1.bf16.msra.mxu0 %v503
    %527 = vmatprep.subr.bf16.mxu0 0
    %528 = vmatpush1.bf16.msra.mxu0 0
    %529 = vmatprep.subr.bf16.mxu0 0
    %530 = vmatpush1.bf16.msra.mxu0 0
    %531 = vmatprep.subr.bf16.mxu0 0
    %532 = vmatpush1.bf16.msra.mxu0 0
    %533 = vmatprep.subr.bf16.mxu0 0
    %534 = vmatpush1.bf16.msra.mxu0 0
    %535 = vmatprep.subr.bf16.mxu0 0
    %536 = vmatpush1.bf16.msra.mxu0 0
    %537 = vmatprep.subr.bf16.mxu0 0
    %538 = vmatpush1.bf16.msra.mxu0 0
    %539 = vmatprep.subr.bf16.mxu0 0
    %540 = vmatpush1.bf16.msra.mxu0 0
    %541 = vmatprep.subr.bf16.mxu0 0
    %542 = vmatpush1.bf16.msra.mxu0 0
    %543 = vmatprep.mubr.bf16.mxu0 0
    %544 = vmatmul.mubr.bf16.gmra.mrb[0].mxu0 %v504
    %v545 = vpop.f32.mrb[0].mxu0
    %v546 = vadd.f32 %v509, %v545
    %v547 = vpop.f32.mrb[0].mxu0
    %v548 = vpop.f32.mrb[0].mxu0
    %v549 = vpop.f32.mrb[0].mxu0
    %550 = vdwg.mxu0
    %vm551 = vcmask 11264
    %552 = vst.msk [vmem:[%s9] sm:$0xf] %vm551, %v546
    // Predicated region
    $region42: #{tpu_custom_call.1} parent=1 // pred_check
      _
    $region43: #{tpu_custom_call.1} parent=1 // pred_check_branch
      %554 = sbr.rel (0) target = $region45
    $region44: #{tpu_custom_call.1} parent=1 // pred_region
      _
    $region45: #{tpu_custom_call.1} parent=1 // pred_fallthru
      _
    // Predicated region
    $region46: #{tpu_custom_call.1} parent=1 // pred_check
      _
    $region47: #{tpu_custom_call.1} parent=1 // pred_check_branch
      %556 = sbr.rel (0) target = $region49
    $region48: #{tpu_custom_call.1} parent=1 // pred_region
      _
    $region49: #{tpu_custom_call.1} parent=1 // pred_fallthru
      _
    %557 = vsyncpa [#allocation4], 1

</llo_original>
